<compile_context>
chip_gen: v7x
topology: tpu7x:2x2x1
jax: 0.10.0
libtpu: 0.0.40
codegen_flags: <defaults>
</compile_context>

<pallas_src>
import functools
import math

import jax
import jax.numpy as jnp
import numpy as np
from jax import lax
from jax.experimental import pallas as pl
from jax.experimental.pallas import tpu as pltpu


def _mha_kernel(vl_ref, q_ref, k_ref, v_ref, wq_ref, wk_ref, wv_ref, wo_ref,
                o_ref, *, num_heads, head_dim, batch_tile):
    """One grid step == one tile of `batch_tile` batch elements, all heads fused.

    vl_ref : (B,) int32 scalar-prefetch ref (SMEM) -- per-batch valid lengths
    q_ref  : (Bt, Sq, Dq) VMEM     k_ref/v_ref : (Bt, Sk, Dk/Dv) VMEM
    wq_ref : (Dq, H*d)    VMEM     wk_ref/wv_ref : (Dk/Dv, H*d) VMEM
    wo_ref : (H*d, nh)    VMEM
    o_ref  : (Bt, Sq, nh) VMEM
    """
    H, d, Bt = num_heads, head_dim, batch_tile
    Sq, Dq = q_ref.shape[1], q_ref.shape[2]
    Sk, Dk = k_ref.shape[1], k_ref.shape[2]
    Dv = v_ref.shape[2]
    Hd = H * d
    nh = o_ref.shape[2]
    cdt = q_ref.dtype                       # matmul-input dtype (f32 or bf16)

    # ---- Fused lane-dense projections: one MXU pass each with N = H*d. ----
    # (1/sqrt(d) has already been folded into W_q by the wrapper.)
    q2 = q_ref[...].reshape(Bt * Sq, Dq)
    k2 = k_ref[...].reshape(Bt * Sk, Dk)
    v2 = v_ref[...].reshape(Bt * Sk, Dv)
    qp = jnp.dot(q2, wq_ref[...], preferred_element_type=jnp.float32)  # (Bt*Sq, Hd)
    kp = jnp.dot(k2, wk_ref[...], preferred_element_type=jnp.float32)  # (Bt*Sk, Hd)
    vp = jnp.dot(v2, wv_ref[...], preferred_element_type=jnp.float32)  # (Bt*Sk, Hd)

    # ---- valid_lens mask: built once on a tiny (Bt, Sk) tensor, broadcast
    #      once to (Bt, Sq, Sk) and reused for every head (mask depends on
    #      neither head nor query position). ----
    b0 = pl.program_id(0) * Bt
    bpos = lax.broadcasted_iota(jnp.int32, (Bt, Sk), 0)
    kpos = lax.broadcasted_iota(jnp.int32, (Bt, Sk), 1)
    limit = jnp.zeros((Bt, Sk), jnp.int32)
    for bi in range(Bt):                    # static unroll over SMEM scalars
        limit = jnp.where(bpos == bi, vl_ref[b0 + bi], limit)
    keep = jnp.broadcast_to((kpos < limit).reshape(Bt, 1, Sk), (Bt, Sq, Sk))

    # ---- Attention per head (static unroll; heads live in contiguous
    #      d-column blocks of the fused projection outputs). ----
    o_heads = []
    for h in range(H):
        lo, hi = h * d, (h + 1) * d
        qh = qp[:, lo:hi].reshape(Bt, Sq, d).astype(cdt)
        kh = kp[:, lo:hi].reshape(Bt, Sk, d).astype(cdt)
        vh = vp[:, lo:hi].reshape(Bt, Sk, d).astype(cdt)

        # Scores contract on the last dims (no K transpose materialized).
        s = jnp.einsum("bqd,bkd->bqk", qh, kh,
                       preferred_element_type=jnp.float32)        # (Bt, Sq, Sk)
        # masked_softmax: key positions >= valid_len(b) are set to -1e6,
        # matching the PyTorch reference (incl. valid_len == 0 -> uniform).
        s = jnp.where(keep, s, jnp.float32(-1e6))
        m = jnp.max(s, axis=-1, keepdims=True)
        e = jnp.exp(s - m)
        p = e * pl.reciprocal(jnp.sum(e, axis=-1, keepdims=True), approx=True)

        oh = jnp.einsum("bqk,bkd->bqd", p.astype(cdt), vh,
                        preferred_element_type=jnp.float32)        # (Bt, Sq, d)
        o_heads.append(oh.astype(cdt))

    # ---- Fused output projection: concat-of-heads @ W_o, K = H*d. ----
    concat = jnp.concatenate(o_heads, axis=-1).reshape(Bt * Sq, Hd)
    out = jnp.dot(concat, wo_ref[...], preferred_element_type=jnp.float32)
    o_ref[...] = out.reshape(Bt, Sq, nh).astype(o_ref.dtype)


def multihead_attention(Q, K, V, valid_lens, params, *, num_heads, num_hiddens,
                        batch_tile=None, compute_dtype=None):
    """Pallas TPU forward of MultiHead_Attention.

    Q: (B,Sq,Dq)  K: (B,Sk,Dk)  V: (B,Sk,Dv)  valid_lens: (B,) int or None.
    params stores nn.Linear weights as (in_features, out_features), y = x @ W.
    compute_dtype: set to jnp.bfloat16 for bf16 MXU inputs on v5e/v6e/v7x
      (accumulation and softmax stay float32).
    batch_tile: batch elements per grid step (default: a divisor of B giving
      >= 2 grid steps so both v7x TensorCores get work and DMA overlaps compute).
    """
    wq, wk, wv, wo = params["wq"], params["wk"], params["wv"], params["wo"]
    B, Sq, Dq = Q.shape
    _, Sk, Dk = K.shape
    Dv = V.shape[-1]
    H, d = num_heads, num_hiddens
    Hd = H * d
    nh = num_hiddens
    out_dtype = Q.dtype

    if batch_tile is None:
        # Aim for >= 4 grid steps when B allows, otherwise >= 2.
        target = max(1, B // 4) if B >= 4 else max(1, B // 2)
        batch_tile = max((bt for bt in range(1, target + 1) if B % bt == 0),
                         default=1)
    Bt = batch_tile
    if B % Bt != 0:
        raise ValueError("batch_tile must divide the batch size")

    if valid_lens is None:
        valid_lens = jnp.full((B,), Sk, dtype=jnp.int32)
    valid_lens = valid_lens.astype(jnp.int32)

    # Fold 1/sqrt(d) into W_q once (wrapper-side); removes a full projected-Q
    # VPU multiply per grid step inside the kernel.
    wq_s = (wq * (1.0 / math.sqrt(d))).astype(wq.dtype)

    if compute_dtype is not None:
        Q, K, V = (x.astype(compute_dtype) for x in (Q, K, V))
        wq_s, wk, wv, wo = (w.astype(compute_dtype)
                            for w in (wq_s, wk, wv, wo))

    kernel = functools.partial(_mha_kernel, num_heads=H, head_dim=d,
                               batch_tile=Bt)

    # Advisory cost estimate for the XLA scheduler.
    flops = 2 * B * Hd * (Sq * Dq + Sk * Dk + Sk * Dv)       # projections
    flops += 2 * B * H * Sq * Sk * d * 2                      # QK^T and PV
    flops += 2 * B * Sq * Hd * nh                             # output proj
    bytes_accessed = sum(int(x.size) * x.dtype.itemsize
                         for x in (Q, K, V, wq_s, wk, wv, wo, valid_lens))
    bytes_accessed += B * Sq * nh * jnp.dtype(out_dtype).itemsize
    cost = pl.CostEstimate(flops=int(flops),
                           transcendentals=int(B * H * Sq * Sk),
                           bytes_accessed=int(bytes_accessed))

    out = pl.pallas_call(
        kernel,
        out_shape=jax.ShapeDtypeStruct((B, Sq, nh), out_dtype),
        grid_spec=pltpu.PrefetchScalarGridSpec(
            num_scalar_prefetch=1,                           # valid_lens -> SMEM
            grid=(B // Bt,),
            in_specs=[
                pl.BlockSpec((Bt, Sq, Dq), lambda i, vl: (i, 0, 0)),   # Q
                pl.BlockSpec((Bt, Sk, Dk), lambda i, vl: (i, 0, 0)),   # K
                pl.BlockSpec((Bt, Sk, Dv), lambda i, vl: (i, 0, 0)),   # V
                # Weights: constant index_map -> single-buffered.
                pl.BlockSpec((Dq, Hd), lambda i, vl: (0, 0),
                             pipeline_mode=pl.Buffered(1)),            # W_q
                pl.BlockSpec((Dk, Hd), lambda i, vl: (0, 0),
                             pipeline_mode=pl.Buffered(1)),            # W_k
                pl.BlockSpec((Dv, Hd), lambda i, vl: (0, 0),
                             pipeline_mode=pl.Buffered(1)),            # W_v
                pl.BlockSpec((Hd, nh), lambda i, vl: (0, 0),
                             pipeline_mode=pl.Buffered(1)),            # W_o
            ],
            out_specs=pl.BlockSpec((Bt, Sq, nh), lambda i, vl: (i, 0, 0)),
        ),
        compiler_params=pltpu.CompilerParams(
            dimension_semantics=("parallel",),
            vmem_limit_bytes=32 * 1024 * 1024),
        cost_estimate=cost,
    )(valid_lens, Q, K, V, wq_s, wk, wv, wo)
    return out


def _reference(Q, K, V, valid_lens, params, *, num_heads, num_hiddens):
    """Pure-JAX reference replicating the PyTorch forward pass exactly."""
    wq, wk, wv, wo = params["wq"], params["wk"], params["wv"], params["wo"]
    B, Sq, _ = Q.shape
    Sk = K.shape[1]
    d = num_hiddens

    def proj_split(x, w):                       # transpose_qkv
        y = x @ w                               # (B, S, H*d)
        y = y.reshape(B, -1, num_heads, d).transpose(0, 2, 1, 3)
        return y.reshape(B * num_heads, -1, d)

    q = proj_split(Q, wq)
    k = proj_split(K, wk)
    v = proj_split(V, wv)

    scores = jnp.einsum("bqd,bkd->bqk", q, k) / math.sqrt(d)
    vl = valid_lens if valid_lens is not None else jnp.full((B,), Sk, jnp.int32)
    vl = jnp.repeat(vl, num_heads, axis=0)                   # (B*H,)
    col = jnp.arange(Sk)[None, None, :]
    scores = jnp.where(col < vl[:, None, None], scores, -1e6)
    p = jax.nn.softmax(scores, axis=-1)
    o = jnp.einsum("bqk,bkd->bqd", p, v)                     # (B*H, Sq, d)

    o = o.reshape(B, num_heads, Sq, d).transpose(0, 2, 1, 3).reshape(B, Sq, -1)
    return o @ wo


if __name__ == "__main__":
    batch = 2
    seq_q = 8
    seq_k = 8
    query_size = key_size = value_size = 32
    num_hiddens = 16
    num_heads = 2
    HD = num_heads * num_hiddens

    key = jax.random.PRNGKey(0)
    ks = jax.random.split(key, 8)
    Q = jax.random.normal(ks[0], (batch, seq_q, query_size), jnp.float32)
    K = jax.random.normal(ks[1], (batch, seq_k, key_size), jnp.float32)
    V = jax.random.normal(ks[2], (batch, seq_k, value_size), jnp.float32)
    valid_lens = jnp.array([3, 6], dtype=jnp.int32)

    # Deterministic parameter init (nn.Linear(..., bias=False) shapes), stored
    # as (in_features, out_features).
    params = {
        "wq": jax.random.normal(ks[3], (query_size, HD), jnp.float32) * 0.1,
        "wk": jax.random.normal(ks[4], (key_size, HD), jnp.float32) * 0.1,
        "wv": jax.random.normal(ks[5], (value_size, HD), jnp.float32) * 0.1,
        "wo": jax.random.normal(ks[6], (HD, num_hiddens), jnp.float32) * 0.1,
    }

    ref = _reference(Q, K, V, valid_lens, params,
                     num_heads=num_heads, num_hiddens=num_hiddens)

    # float32 path (tolerance covers the approximate softmax reciprocal).
    out = multihead_attention(Q, K, V, valid_lens, params,
                              num_heads=num_heads, num_hiddens=num_hiddens)
    out = jax.block_until_ready(out)
    np.testing.assert_allclose(np.asarray(out), np.asarray(ref),
                               rtol=2e-3, atol=2e-3)

    # bf16 matmul-input path (bf16-native MXUs on v5e/v6e/v7x), f32 accumulation.
    out_bf16 = multihead_attention(Q, K, V, valid_lens, params,
                                   num_heads=num_heads,
                                   num_hiddens=num_hiddens,
                                   compute_dtype=jnp.bfloat16)
    out_bf16 = jax.block_until_ready(out_bf16)
    np.testing.assert_allclose(np.asarray(out_bf16), np.asarray(ref),
                               rtol=5e-2, atol=5e-2)

    print("KERNEL_OK")
</pallas_src>

<mosaic_0001>
module attributes {stable_mosaic.version = 11 : i64} {
  func.func @_mha_kernel(%arg0: i32, %arg1: memref<2xi32, #tpu.memory_space<smem>>, %arg2: memref<1x8x32xf32, #tpu.memory_space<vmem>>, %arg3: memref<1x8x32xf32, #tpu.memory_space<vmem>>, %arg4: memref<1x8x32xf32, #tpu.memory_space<vmem>>, %arg5: memref<32x32xf32, #tpu.memory_space<vmem>>, %arg6: memref<32x32xf32, #tpu.memory_space<vmem>>, %arg7: memref<32x32xf32, #tpu.memory_space<vmem>>, %arg8: memref<32x16xf32, #tpu.memory_space<vmem>>, %arg9: memref<1x8x16xf32, #tpu.memory_space<vmem>>) attributes {dimension_semantics = [#tpu.dimension_semantics<parallel>], iteration_bounds = array<i64: 2>, scalar_prefetch = 1 : i64, scratch_operands = 0 : i64, tpu.core_type = #tpu.core_type<tc>, window_params = [{transform_indices = @transform_0, window_bounds = array<i64: 1, 8, 32>}, {transform_indices = @transform_1, window_bounds = array<i64: 1, 8, 32>}, {transform_indices = @transform_2, window_bounds = array<i64: 1, 8, 32>}, {pipeline_mode = #tpu.pipeline_mode<synchronous>, transform_indices = @transform_3, window_bounds = array<i64: 32, 32>}, {pipeline_mode = #tpu.pipeline_mode<synchronous>, transform_indices = @transform_4, window_bounds = array<i64: 32, 32>}, {pipeline_mode = #tpu.pipeline_mode<synchronous>, transform_indices = @transform_5, window_bounds = array<i64: 32, 32>}, {pipeline_mode = #tpu.pipeline_mode<synchronous>, transform_indices = @transform_6, window_bounds = array<i64: 32, 16>}, {transform_indices = @transform_7, window_bounds = array<i64: 1, 8, 16>}]} {
    %c0 = arith.constant 0 : index
    %c0_0 = arith.constant 0 : index
    %c0_1 = arith.constant 0 : index
    %0 = vector.load %arg2[%c0, %c0_0, %c0_1] : memref<1x8x32xf32, #tpu.memory_space<vmem>>, vector<1x8x32xf32>
    %1 = vector.shape_cast %0 : vector<1x8x32xf32> to vector<8x32xf32>
    %c0_2 = arith.constant 0 : index
    %c0_3 = arith.constant 0 : index
    %c0_4 = arith.constant 0 : index
    %2 = vector.load %arg3[%c0_2, %c0_3, %c0_4] : memref<1x8x32xf32, #tpu.memory_space<vmem>>, vector<1x8x32xf32>
    %3 = vector.shape_cast %2 : vector<1x8x32xf32> to vector<8x32xf32>
    %c0_5 = arith.constant 0 : index
    %c0_6 = arith.constant 0 : index
    %c0_7 = arith.constant 0 : index
    %4 = vector.load %arg4[%c0_5, %c0_6, %c0_7] : memref<1x8x32xf32, #tpu.memory_space<vmem>>, vector<1x8x32xf32>
    %5 = vector.shape_cast %4 : vector<1x8x32xf32> to vector<8x32xf32>
    %c0_8 = arith.constant 0 : index
    %c0_9 = arith.constant 0 : index
    %6 = vector.load %arg5[%c0_8, %c0_9] : memref<32x32xf32, #tpu.memory_space<vmem>>, vector<32x32xf32>
    %cst = arith.constant dense<0.000000e+00> : vector<8x32xf32>
    %7 = tpu.matmul %1, %6, %cst {dimension_numbers = #tpu.dot_dimension_numbers<[1], [0], [0], [1], [0, 0, 1, 1], [], []>} : vector<8x32xf32>, vector<32x32xf32>, vector<8x32xf32> -> vector<8x32xf32>
    %c0_10 = arith.constant 0 : index
    %c0_11 = arith.constant 0 : index
    %8 = vector.load %arg6[%c0_10, %c0_11] : memref<32x32xf32, #tpu.memory_space<vmem>>, vector<32x32xf32>
    %cst_12 = arith.constant dense<0.000000e+00> : vector<8x32xf32>
    %9 = tpu.matmul %3, %8, %cst_12 {dimension_numbers = #tpu.dot_dimension_numbers<[1], [0], [0], [1], [0, 0, 1, 1], [], []>} : vector<8x32xf32>, vector<32x32xf32>, vector<8x32xf32> -> vector<8x32xf32>
    %c0_13 = arith.constant 0 : index
    %c0_14 = arith.constant 0 : index
    %10 = vector.load %arg7[%c0_13, %c0_14] : memref<32x32xf32, #tpu.memory_space<vmem>>, vector<32x32xf32>
    %cst_15 = arith.constant dense<0.000000e+00> : vector<8x32xf32>
    %11 = tpu.matmul %5, %10, %cst_15 {dimension_numbers = #tpu.dot_dimension_numbers<[1], [0], [0], [1], [0, 0, 1, 1], [], []>} : vector<8x32xf32>, vector<32x32xf32>, vector<8x32xf32> -> vector<8x32xf32>
    %c1_i32 = arith.constant 1 : i32
    %12 = arith.muli %arg0, %c1_i32 : i32
    %13 = tpu.iota {dimensions = array<i32: 0>} : vector<1x8xi32>
    %14 = tpu.iota {dimensions = array<i32: 1>} : vector<1x8xi32>
    %c0_i32 = arith.constant 0 : i32
    %15 = vector.broadcast %c0_i32 : i32 to vector<1x8xi32>
    %c0_i32_16 = arith.constant 0 : i32
    %16 = vector.broadcast %c0_i32_16 : i32 to vector<1x8xi32>
    %17 = arith.cmpi eq, %13, %16 : vector<1x8xi32>
    %c0_i32_17 = arith.constant 0 : i32
    %18 = arith.addi %12, %c0_i32_17 : i32
    %19 = arith.index_cast %18 : i32 to index
    %20 = memref.load %arg1[%19] : memref<2xi32, #tpu.memory_space<smem>>
    %21 = vector.broadcast %20 : i32 to vector<1x8xi32>
    %22 = arith.select %17, %21, %15 : vector<1x8xi1>, vector<1x8xi32>
    %23 = arith.cmpi slt, %14, %22 : vector<1x8xi32>
    %24 = vector.shape_cast %23 : vector<1x8xi1> to vector<1x1x8xi1>
    %25 = vector.shape_cast %24 : vector<1x1x8xi1> to vector<1x1x8xi1>
    %26 = vector.broadcast %25 : vector<1x1x8xi1> to vector<1x8x8xi1>
    %27 = vector.extract_strided_slice %7 {offsets = [0, 0], sizes = [8, 16], strides = [1, 1]} : vector<8x32xf32> to vector<8x16xf32>
    %28 = vector.shape_cast %27 : vector<8x16xf32> to vector<1x8x16xf32>
    %29 = vector.extract_strided_slice %9 {offsets = [0, 0], sizes = [8, 16], strides = [1, 1]} : vector<8x32xf32> to vector<8x16xf32>
    %30 = vector.shape_cast %29 : vector<8x16xf32> to vector<1x8x16xf32>
    %31 = vector.extract_strided_slice %11 {offsets = [0, 0], sizes = [8, 16], strides = [1, 1]} : vector<8x32xf32> to vector<8x16xf32>
    %32 = vector.shape_cast %31 : vector<8x16xf32> to vector<1x8x16xf32>
    "tpu.trace_start"() <{level = 10 : i32, message = "bqd,bkd->bqk"}> : () -> ()
    %cst_18 = arith.constant dense<0.000000e+00> : vector<1x8x8xf32>
    %33 = tpu.matmul %28, %30, %cst_18 {dimension_numbers = #tpu.dot_dimension_numbers<[2], [2], [1], [1], [0, 0, 0, 1, 1, 1], [0], [0]>} : vector<1x8x16xf32>, vector<1x8x16xf32>, vector<1x8x8xf32> -> vector<1x8x8xf32>
    %cst_19 = arith.constant -1.000000e+06 : f32
    "tpu.trace_stop"() : () -> ()
    %34 = vector.broadcast %cst_19 : f32 to vector<1x8x8xf32>
    %35 = arith.select %26, %33, %34 : vector<1x8x8xi1>, vector<1x8x8xf32>
    %cst_20 = arith.constant dense<0xFF800000> : vector<1x8xf32>
    %36 = vector.multi_reduction <maximumf>, %35, %cst_20 [2] : vector<1x8x8xf32> to vector<1x8xf32>
    %37 = vector.shape_cast %36 : vector<1x8xf32> to vector<1x8x1xf32>
    %38 = vector.broadcast %37 : vector<1x8x1xf32> to vector<1x8x8xf32>
    %39 = arith.subf %35, %38 : vector<1x8x8xf32>
    %40 = math.exp %39 : vector<1x8x8xf32>
    %cst_21 = arith.constant dense<0.000000e+00> : vector<1x8xf32>
    %41 = vector.multi_reduction <add>, %40, %cst_21 [2] : vector<1x8x8xf32> to vector<1x8xf32>
    %42 = vector.shape_cast %41 : vector<1x8xf32> to vector<1x8x1xf32>
    %43 = tpu.reciprocal %42 {approx = true} : vector<1x8x1xf32> -> vector<1x8x1xf32>
    %44 = vector.broadcast %43 : vector<1x8x1xf32> to vector<1x8x8xf32>
    %45 = arith.mulf %40, %44 : vector<1x8x8xf32>
    "tpu.trace_start"() <{level = 10 : i32, message = "bqk,bkd->bqd"}> : () -> ()
    %cst_22 = arith.constant dense<0.000000e+00> : vector<1x8x16xf32>
    %46 = tpu.matmul %45, %32, %cst_22 {dimension_numbers = #tpu.dot_dimension_numbers<[2], [1], [1], [2], [0, 0, 0, 1, 1, 2], [0], [0]>} : vector<1x8x8xf32>, vector<1x8x16xf32>, vector<1x8x16xf32> -> vector<1x8x16xf32>
    "tpu.trace_stop"() : () -> ()
    %47 = vector.extract_strided_slice %7 {offsets = [0, 16], sizes = [8, 16], strides = [1, 1]} : vector<8x32xf32> to vector<8x16xf32>
    %48 = vector.shape_cast %47 : vector<8x16xf32> to vector<1x8x16xf32>
    %49 = vector.extract_strided_slice %9 {offsets = [0, 16], sizes = [8, 16], strides = [1, 1]} : vector<8x32xf32> to vector<8x16xf32>
    %50 = vector.shape_cast %49 : vector<8x16xf32> to vector<1x8x16xf32>
    %51 = vector.extract_strided_slice %11 {offsets = [0, 16], sizes = [8, 16], strides = [1, 1]} : vector<8x32xf32> to vector<8x16xf32>
    %52 = vector.shape_cast %51 : vector<8x16xf32> to vector<1x8x16xf32>
    "tpu.trace_start"() <{level = 10 : i32, message = "bqd,bkd->bqk"}> : () -> ()
    %cst_23 = arith.constant dense<0.000000e+00> : vector<1x8x8xf32>
    %53 = tpu.matmul %48, %50, %cst_23 {dimension_numbers = #tpu.dot_dimension_numbers<[2], [2], [1], [1], [0, 0, 0, 1, 1, 1], [0], [0]>} : vector<1x8x16xf32>, vector<1x8x16xf32>, vector<1x8x8xf32> -> vector<1x8x8xf32>
    %cst_24 = arith.constant -1.000000e+06 : f32
    "tpu.trace_stop"() : () -> ()
    %54 = vector.broadcast %cst_24 : f32 to vector<1x8x8xf32>
    %55 = arith.select %26, %53, %54 : vector<1x8x8xi1>, vector<1x8x8xf32>
    %cst_25 = arith.constant dense<0xFF800000> : vector<1x8xf32>
    %56 = vector.multi_reduction <maximumf>, %55, %cst_25 [2] : vector<1x8x8xf32> to vector<1x8xf32>
    %57 = vector.shape_cast %56 : vector<1x8xf32> to vector<1x8x1xf32>
    %58 = vector.broadcast %57 : vector<1x8x1xf32> to vector<1x8x8xf32>
    %59 = arith.subf %55, %58 : vector<1x8x8xf32>
    %60 = math.exp %59 : vector<1x8x8xf32>
    %cst_26 = arith.constant dense<0.000000e+00> : vector<1x8xf32>
    %61 = vector.multi_reduction <add>, %60, %cst_26 [2] : vector<1x8x8xf32> to vector<1x8xf32>
    %62 = vector.shape_cast %61 : vector<1x8xf32> to vector<1x8x1xf32>
    %63 = tpu.reciprocal %62 {approx = true} : vector<1x8x1xf32> -> vector<1x8x1xf32>
    %64 = vector.broadcast %63 : vector<1x8x1xf32> to vector<1x8x8xf32>
    %65 = arith.mulf %60, %64 : vector<1x8x8xf32>
    "tpu.trace_start"() <{level = 10 : i32, message = "bqk,bkd->bqd"}> : () -> ()
    %cst_27 = arith.constant dense<0.000000e+00> : vector<1x8x16xf32>
    %66 = tpu.matmul %65, %52, %cst_27 {dimension_numbers = #tpu.dot_dimension_numbers<[2], [1], [1], [2], [0, 0, 0, 1, 1, 2], [0], [0]>} : vector<1x8x8xf32>, vector<1x8x16xf32>, vector<1x8x16xf32> -> vector<1x8x16xf32>
    "tpu.trace_stop"() : () -> ()
    %67 = tpu.concatenate %46, %66 in 2 : vector<1x8x16xf32>, vector<1x8x16xf32> -> vector<1x8x32xf32>
    %68 = vector.shape_cast %67 : vector<1x8x32xf32> to vector<8x32xf32>
    %c0_28 = arith.constant 0 : index
    %c0_29 = arith.constant 0 : index
    %69 = vector.load %arg8[%c0_28, %c0_29] : memref<32x16xf32, #tpu.memory_space<vmem>>, vector<32x16xf32>
    %cst_30 = arith.constant dense<0.000000e+00> : vector<8x16xf32>
    %70 = tpu.matmul %68, %69, %cst_30 {dimension_numbers = #tpu.dot_dimension_numbers<[1], [0], [0], [1], [0, 0, 1, 1], [], []>} : vector<8x32xf32>, vector<32x16xf32>, vector<8x16xf32> -> vector<8x16xf32>
    %71 = vector.shape_cast %70 : vector<8x16xf32> to vector<1x8x16xf32>
    %c0_31 = arith.constant 0 : index
    %c0_32 = arith.constant 0 : index
    %c0_33 = arith.constant 0 : index
    %72 = vector.load %arg9[%c0_31, %c0_32, %c0_33] : memref<1x8x16xf32, #tpu.memory_space<vmem>>, vector<1x8x16xf32>
    tpu.vector_store %arg9[%c0_31, %c0_32, %c0_33], %71 {strides = array<i32>} : memref<1x8x16xf32, #tpu.memory_space<vmem>>, vector<1x8x16xf32>,
    return
  }
  func.func @transform_0(%arg0: i32, %arg1: memref<2xi32, #tpu.memory_space<smem>>) -> (i32, i32, i32) {
    %c0_i32 = arith.constant 0 : i32
    %c0_i32_0 = arith.constant 0 : i32
    %c0_i32_1 = arith.constant 0 : i32
    return %arg0, %c0_i32, %c0_i32_0 : i32, i32, i32
  }
  func.func @transform_1(%arg0: i32, %arg1: memref<2xi32, #tpu.memory_space<smem>>) -> (i32, i32, i32) {
    %c0_i32 = arith.constant 0 : i32
    %c0_i32_0 = arith.constant 0 : i32
    %c0_i32_1 = arith.constant 0 : i32
    return %arg0, %c0_i32, %c0_i32_0 : i32, i32, i32
  }
  func.func @transform_2(%arg0: i32, %arg1: memref<2xi32, #tpu.memory_space<smem>>) -> (i32, i32, i32) {
    %c0_i32 = arith.constant 0 : i32
    %c0_i32_0 = arith.constant 0 : i32
    %c0_i32_1 = arith.constant 0 : i32
    return %arg0, %c0_i32, %c0_i32_0 : i32, i32, i32
  }
  func.func @transform_3(%arg0: i32, %arg1: memref<2xi32, #tpu.memory_space<smem>>) -> (i32, i32) {
    %c0_i32 = arith.constant 0 : i32
    %c0_i32_0 = arith.constant 0 : i32
    %c0_i32_1 = arith.constant 0 : i32
    return %c0_i32, %c0_i32_0 : i32, i32
  }
  func.func @transform_4(%arg0: i32, %arg1: memref<2xi32, #tpu.memory_space<smem>>) -> (i32, i32) {
    %c0_i32 = arith.constant 0 : i32
    %c0_i32_0 = arith.constant 0 : i32
    %c0_i32_1 = arith.constant 0 : i32
    return %c0_i32, %c0_i32_0 : i32, i32
  }
  func.func @transform_5(%arg0: i32, %arg1: memref<2xi32, #tpu.memory_space<smem>>) -> (i32, i32) {
    %c0_i32 = arith.constant 0 : i32
    %c0_i32_0 = arith.constant 0 : i32
    %c0_i32_1 = arith.constant 0 : i32
    return %c0_i32, %c0_i32_0 : i32, i32
  }
  func.func @transform_6(%arg0: i32, %arg1: memref<2xi32, #tpu.memory_space<smem>>) -> (i32, i32) {
    %c0_i32 = arith.constant 0 : i32
    %c0_i32_0 = arith.constant 0 : i32
    %c0_i32_1 = arith.constant 0 : i32
    return %c0_i32, %c0_i32_0 : i32, i32
  }
  func.func @transform_7(%arg0: i32, %arg1: memref<2xi32, #tpu.memory_space<smem>>) -> (i32, i32, i32) {
    %c0_i32 = arith.constant 0 : i32
    %c0_i32_0 = arith.constant 0 : i32
    %c0_i32_1 = arith.constant 0 : i32
    return %arg0, %c0_i32, %c0_i32_0 : i32, i32, i32
  }
}

</mosaic_0001>

<llo_original>
// kernel: tpu_custom_call.1
$region0: #{tpu_custom_call.1}
  #allocation0 [shape = 'u32[]', space=smem, size = 0x4, offset = 0x4, fixed_abs, tag = 'smem constant byte address 0x4 - core index']
  #allocation1 [shape = 'u32[144,128]{1,0:T(1,128)}', space=vmem, size = 0x12000, scoped, tag = 'internal scratch']
  #allocation2 [shape = 's32[1]{0}', space=sflag, size = 0x4, scoped, tag = 'scoped memory for tpu_custom_call.1']
  #allocation3 [shape = 'u8[512]{0}', space=smem, size = 0x200, scoped, tag = 'prefetched SMEM operand 0']
  %s0 = inlined_call_operand.vmem [shape: s32[2], index: 0, kind: input, shape index: {}]
  %s1 = inlined_call_operand.hbm [shape: f32[2,8,32], index: 1, kind: input, shape index: {}]
  %s2 = inlined_call_operand.hbm [shape: f32[2,8,32], index: 2, kind: input, shape index: {}]
  %s3 = inlined_call_operand.hbm [shape: f32[2,8,32], index: 3, kind: input, shape index: {}]
  %s4 = inlined_call_operand.vmem [shape: f32[32,32], index: 4, kind: input, shape index: {}]
  %s5 = inlined_call_operand.vmem [shape: f32[32,32], index: 5, kind: input, shape index: {}]
  %s6 = inlined_call_operand.hbm [shape: f32[32,32], index: 6, kind: input, shape index: {}]
  %s7 = inlined_call_operand.vmem [shape: f32[32,16], index: 7, kind: input, shape index: {}]
  %s8 = inlined_call_operand.hbm [shape: f32[2,8,16], index: 8, kind: output, shape index: {}]
  %s9 = sld [smem:[#allocation0]]
  $region77: #{tpu_custom_call.1} parent=0
    _
  %s11 = ssub.s32 1, %s9
  %s12 = scalar_select 0, %s11, %s9
  %s13 = sshll.u32 %s0, 4
  %s14 = int_to_ptr.vmem [resolvable:$true] %s13
  %16 = dma.vmem_to_smem %s14, 16, [#allocation3], [#allocation2]
  %17 = dma.done [#allocation2], 16
  %18 = sfence
  $region1: #{tpu_custom_call.1} parent=0
    #allocation4 [shape = 'u8[8192]{0}', space=vmem, size = 0x2000, scoped, tag = 'input window, operand 1']
    #allocation5 [shape = 's32[2]{0}', space=sflag, size = 0x8, scoped, tag = 'scoped memory for tpu_custom_call.1']
    #allocation6 [shape = 's32[2]{0}', space=sflag, size = 0x8, scoped, tag = 'scoped memory for tpu_custom_call.1']
    #allocation7 [shape = 'u8[8192]{0}', space=vmem, size = 0x2000, scoped, tag = 'input window, operand 2']
    #allocation8 [shape = 's32[2]{0}', space=sflag, size = 0x8, scoped, tag = 'scoped memory for tpu_custom_call.1']
    #allocation9 [shape = 'u8[8192]{0}', space=vmem, size = 0x2000, scoped, tag = 'input window, operand 3']
    #allocation10 [shape = 'u8[16384]{0}', space=vmem, size = 0x4000, scoped, tag = 'input window, operand 6, single buffered']
    #allocation11 [shape = 's32[1]{0}', space=sflag, size = 0x4, scoped, tag = 'scoped memory for tpu_custom_call.1']
    #allocation12 [shape = 'u8[8192]{0}', space=vmem, size = 0x2000, scoped, tag = 'output window, operand 0']
    %19 = vsyncpa [#allocation5], 0
    %s20 = scalar_lea.sflag [#allocation5], 1
    %21 = vsyncpa %s20, 0
    %22 = vsyncpa [#allocation8], 0
    %s23 = scalar_lea.sflag [#allocation8], 1
    %24 = vsyncpa %s23, 0
    %25 = vsyncpa [#allocation11], 0
    %26 = vsyncpa [#allocation6], 0
    %s27 = scalar_lea.sflag [#allocation6], 1
    %28 = vsyncpa %s27, 0
    loop: start=0, step=1, limit=4
    $region2: #{tpu_custom_call.1} parent=1 // loop_pre_header
      _
    $region3: #{tpu_custom_call.1} parent=1 // loop_header
      %s30 = sphi 0, %s34
      %p31 = scmp.ge.s32.totalorder %s30, 4
      %s40 = sphi 0, %s42
      %s43 = sphi 0, %s40
      %s44 = sphi 0, %s43
      %s60 = sphi 0, %s44
      %s66 = sphi 0, %s68
      %s69 = sphi 0, %s66
      %s70 = sphi 0, %s69
      %s86 = sphi 0, %s70
      %s92 = sphi 0, %s94
      %s95 = sphi 0, %s92
      %s96 = sphi 0, %s95
      %s112 = sphi 0, %s96
      %s116 = sphi 0, %s116
      %s118 = sphi 0, %s116
      %s119 = sphi 0, %s118
      %s133 = sphi 0, %s119
      %s137 = sphi 0, %s137
      %s139 = sphi 0, %s137
      %s140 = sphi 0, %s139
      %s154 = sphi 0, %s140
      %s158 = sphi 0, %s158
      %s160 = sphi 0, %s158
      %s161 = sphi 0, %s160
      %s175 = sphi 0, %s161
      %s179 = sphi 0, %s179
      %s181 = sphi 0, %s179
      %s182 = sphi 0, %s181
      %s196 = sphi 0, %s182
      %s202 = sphi 0, %s204
      %s205 = sphi 0, %s202
      %s206 = sphi 0, %s205
      %s222 = sphi 0, %s206
    $region4: #{tpu_custom_call.1} parent=1 // loop_header_branch
      %33 = sbr.rel (%p31) target = $region8
    $region5: #{tpu_custom_call.1} parent=1 // loop_body
      %s35 = ssub.s32 %s30, 1
      %s36 = ssub.s32 %s30, 2
      %s37 = sadd.s32 %s30, 1
      %s38 = ssub.s32 %s30, %s37
      %p39 = scmp.eq.s32.totalorder %s38, 0
      %s41 = sadd.s32 %s40, 1
      %s42 = scalar_select %p39, %s40, %s41
      %p45 = pneg %p39
      %p46 = scmp.eq.s32.totalorder %s30, 1
      %p47 = por %p45, %p46
      %p48 = scmp.ne.s32.totalorder %s40, %s43
      %p49 = scmp.eq.s32.totalorder %s30, 0
      %p50 = por %p48, %p49
      %p51 = scmp.ne.s32.totalorder %s40, %s43
      %p52 = scmp.eq.s32.totalorder %s35, 1
      %p53 = por %p51, %p52
      %p54 = scmp.ne.s32.totalorder %s43, %s44
      %p55 = scmp.eq.s32.totalorder %s35, 0
      %p56 = por %p54, %p55
      %p57 = scmp.ne.s32.totalorder %s43, %s44
      %p58 = scmp.eq.s32.totalorder %s36, 1
      %p59 = por %p57, %p58
      %p61 = scmp.ne.s32.totalorder %s44, %s60
      %p62 = scmp.eq.s32.totalorder %s36, 0
      %p63 = por %p61, %p62
      %s64 = ssub.s32 %s30, %s37
      %p65 = scmp.eq.s32.totalorder %s64, 0
      %s67 = sadd.s32 %s66, 1
      %s68 = scalar_select %p65, %s66, %s67
      %p71 = pneg %p65
      %p72 = scmp.eq.s32.totalorder %s30, 1
      %p73 = por %p71, %p72
      %p74 = scmp.ne.s32.totalorder %s66, %s69
      %p75 = scmp.eq.s32.totalorder %s30, 0
      %p76 = por %p74, %p75
      %p77 = scmp.ne.s32.totalorder %s66, %s69
      %p78 = scmp.eq.s32.totalorder %s35, 1
      %p79 = por %p77, %p78
      %p80 = scmp.ne.s32.totalorder %s69, %s70
      %p81 = scmp.eq.s32.totalorder %s35, 0
      %p82 = por %p80, %p81
      %p83 = scmp.ne.s32.totalorder %s69, %s70
      %p84 = scmp.eq.s32.totalorder %s36, 1
      %p85 = por %p83, %p84
      %p87 = scmp.ne.s32.totalorder %s70, %s86
      %p88 = scmp.eq.s32.totalorder %s36, 0
      %p89 = por %p87, %p88
      %s90 = ssub.s32 %s30, %s37
      %p91 = scmp.eq.s32.totalorder %s90, 0
      %s93 = sadd.s32 %s92, 1
      %s94 = scalar_select %p91, %s92, %s93
      %p97 = pneg %p91
      %p98 = scmp.eq.s32.totalorder %s30, 1
      %p99 = por %p97, %p98
      %p100 = scmp.ne.s32.totalorder %s92, %s95
      %p101 = scmp.eq.s32.totalorder %s30, 0
      %p102 = por %p100, %p101
      %p103 = scmp.ne.s32.totalorder %s92, %s95
      %p104 = scmp.eq.s32.totalorder %s35, 1
      %p105 = por %p103, %p104
      %p106 = scmp.ne.s32.totalorder %s95, %s96
      %p107 = scmp.eq.s32.totalorder %s35, 0
      %p108 = por %p106, %p107
      %p109 = scmp.ne.s32.totalorder %s95, %s96
      %p110 = scmp.eq.s32.totalorder %s36, 1
      %p111 = por %p109, %p110
      %p113 = scmp.ne.s32.totalorder %s96, %s112
      %p114 = scmp.eq.s32.totalorder %s36, 0
      %p115 = por %p113, %p114
      %s117 = sadd.s32 %s116, 1
      %p120 = scmp.eq.s32.totalorder %s30, 1
      %p121 = scmp.ne.s32.totalorder %s116, %s118
      %p122 = scmp.eq.s32.totalorder %s30, 0
      %p123 = por %p121, %p122
      %p124 = scmp.ne.s32.totalorder %s116, %s118
      %p125 = scmp.eq.s32.totalorder %s35, 1
      %p126 = por %p124, %p125
      %p127 = scmp.ne.s32.totalorder %s118, %s119
      %p128 = scmp.eq.s32.totalorder %s35, 0
      %p129 = por %p127, %p128
      %p130 = scmp.ne.s32.totalorder %s118, %s119
      %p131 = scmp.eq.s32.totalorder %s36, 1
      %p132 = por %p130, %p131
      %p134 = scmp.ne.s32.totalorder %s119, %s133
      %p135 = scmp.eq.s32.totalorder %s36, 0
      %p136 = por %p134, %p135
      %s138 = sadd.s32 %s137, 1
      %p141 = scmp.eq.s32.totalorder %s30, 1
      %p142 = scmp.ne.s32.totalorder %s137, %s139
      %p143 = scmp.eq.s32.totalorder %s30, 0
      %p144 = por %p142, %p143
      %p145 = scmp.ne.s32.totalorder %s137, %s139
      %p146 = scmp.eq.s32.totalorder %s35, 1
      %p147 = por %p145, %p146
      %p148 = scmp.ne.s32.totalorder %s139, %s140
      %p149 = scmp.eq.s32.totalorder %s35, 0
      %p150 = por %p148, %p149
      %p151 = scmp.ne.s32.totalorder %s139, %s140
      %p152 = scmp.eq.s32.totalorder %s36, 1
      %p153 = por %p151, %p152
      %p155 = scmp.ne.s32.totalorder %s140, %s154
      %p156 = scmp.eq.s32.totalorder %s36, 0
      %p157 = por %p155, %p156
      %s159 = sadd.s32 %s158, 1
      %p162 = scmp.eq.s32.totalorder %s30, 1
      %p163 = scmp.ne.s32.totalorder %s158, %s160
      %p164 = scmp.eq.s32.totalorder %s30, 0
      %p165 = por %p163, %p164
      %p166 = scmp.ne.s32.totalorder %s158, %s160
      %p167 = scmp.eq.s32.totalorder %s35, 1
      %p168 = por %p166, %p167
      %p169 = scmp.ne.s32.totalorder %s160, %s161
      %p170 = scmp.eq.s32.totalorder %s35, 0
      %p171 = por %p169, %p170
      %p172 = scmp.ne.s32.totalorder %s160, %s161
      %p173 = scmp.eq.s32.totalorder %s36, 1
      %p174 = por %p172, %p173
      %p176 = scmp.ne.s32.totalorder %s161, %s175
      %p177 = scmp.eq.s32.totalorder %s36, 0
      %p178 = por %p176, %p177
      %s180 = sadd.s32 %s179, 1
      %p183 = scmp.eq.s32.totalorder %s30, 1
      %p184 = scmp.ne.s32.totalorder %s179, %s181
      %p185 = scmp.eq.s32.totalorder %s30, 0
      %p186 = por %p184, %p185
      %p187 = scmp.ne.s32.totalorder %s179, %s181
      %p188 = scmp.eq.s32.totalorder %s35, 1
      %p189 = por %p187, %p188
      %p190 = scmp.ne.s32.totalorder %s181, %s182
      %p191 = scmp.eq.s32.totalorder %s35, 0
      %p192 = por %p190, %p191
      %p193 = scmp.ne.s32.totalorder %s181, %s182
      %p194 = scmp.eq.s32.totalorder %s36, 1
      %p195 = por %p193, %p194
      %p197 = scmp.ne.s32.totalorder %s182, %s196
      %p198 = scmp.eq.s32.totalorder %s36, 0
      %p199 = por %p197, %p198
      %s200 = ssub.s32 %s30, %s37
      %p201 = scmp.eq.s32.totalorder %s200, 0
      %s203 = sadd.s32 %s202, 1
      %s204 = scalar_select %p201, %s202, %s203
      %p207 = pneg %p201
      %p208 = scmp.eq.s32.totalorder %s30, 1
      %p209 = por %p207, %p208
      %p210 = scmp.ne.s32.totalorder %s202, %s205
      %p211 = scmp.eq.s32.totalorder %s30, 0
      %p212 = por %p210, %p211
      %p213 = scmp.ne.s32.totalorder %s202, %s205
      %p214 = scmp.eq.s32.totalorder %s35, 1
      %p215 = por %p213, %p214
      %p216 = scmp.ne.s32.totalorder %s205, %s206
      %p217 = scmp.eq.s32.totalorder %s35, 0
      %p218 = por %p216, %p217
      %p219 = scmp.ne.s32.totalorder %s205, %s206
      %p220 = scmp.eq.s32.totalorder %s36, 1
      %p221 = por %p219, %p220
      %p223 = scmp.ne.s32.totalorder %s206, %s222
      %p224 = scmp.eq.s32.totalorder %s36, 0
      %p225 = por %p223, %p224
      %p226 = scmp.le.s32.totalorder 1, %s30
      %p227 = scmp.lt.s32.totalorder %s30, 3
      %p228 = pnand %p226, %p227
      %p229 = pneg %p228
      // Predicated region
      $region9: #{tpu_custom_call.1} parent=5 // pred_check
        _
      $region10: #{tpu_custom_call.1} parent=5 // pred_check_branch
        %231 = sbr.rel (%p228) target = $region12
      $region11: #{tpu_custom_call.1} parent=5 // pred_region
        %s232 = ssub.s32 %s30, 1
        // Predicated region
        $region13: #{tpu_custom_call.1} parent=11 // pred_check
          %p233 = pneg %p129
        $region14: #{tpu_custom_call.1} parent=11 // pred_check_branch
          %235 = sbr.rel (%p233) target = $region16
        $region15: #{tpu_custom_call.1} parent=11 // pred_region
          _
        $region16: #{tpu_custom_call.1} parent=11 // pred_fallthru
          _
        // Predicated region
        $region17: #{tpu_custom_call.1} parent=11 // pred_check
          %p236 = pneg %p150
        $region18: #{tpu_custom_call.1} parent=11 // pred_check_branch
          %238 = sbr.rel (%p236) target = $region20
        $region19: #{tpu_custom_call.1} parent=11 // pred_region
          _
        $region20: #{tpu_custom_call.1} parent=11 // pred_fallthru
          _
        // Predicated region
        $region21: #{tpu_custom_call.1} parent=11 // pred_check
          %p239 = pneg %p171
        $region22: #{tpu_custom_call.1} parent=11 // pred_check_branch
          %241 = sbr.rel (%p239) target = $region24
        $region23: #{tpu_custom_call.1} parent=11 // pred_region
          %s243 = ssub.s32 512, 512
          %244 = vsyncadd [#allocation11], %s243
          %s245 = sshll.u32 [#allocation10], 4
          %s246 = int_to_ptr.vmem [resolvable:$true] %s245
          %251 = dma.hbm_to_vmem [thread:$0]  %s6, 512, %s246, [#allocation11], 128, 128, 8
        $region24: #{tpu_custom_call.1} parent=11 // pred_fallthru
          _
        // Predicated region
        $region25: #{tpu_custom_call.1} parent=11 // pred_check
          %p252 = pneg %p192
        $region26: #{tpu_custom_call.1} parent=11 // pred_check_branch
          %254 = sbr.rel (%p252) target = $region28
        $region27: #{tpu_custom_call.1} parent=11 // pred_region
          _
        $region28: #{tpu_custom_call.1} parent=11 // pred_fallthru
          _
      $region12: #{tpu_custom_call.1} parent=5 // pred_fallthru
        _
      %p255 = scmp.lt.s32.totalorder %s30, 2
      // Predicated region
      $region29: #{tpu_custom_call.1} parent=5 // pred_check
        %p256 = pneg %p255
      $region30: #{tpu_custom_call.1} parent=5 // pred_check_branch
        %258 = sbr.rel (%p256) target = $region32
      $region31: #{tpu_custom_call.1} parent=5 // pred_region
        // Predicated region
        $region33: #{tpu_custom_call.1} parent=31 // pred_check
          %p259 = pneg %p50
        $region34: #{tpu_custom_call.1} parent=31 // pred_check_branch
          %261 = sbr.rel (%p259) target = $region36
        $region35: #{tpu_custom_call.1} parent=31 // pred_region
          %s262 = sand.u32 %s40, 1
          %s263 = scalar_lea.sflag [#allocation5], %s262
          %s264 = sand.u32 %s40, 1
          %s265 = smul.addr %s264, 8
          %s266 = scalar_lea.vmem [#allocation4], %s265
          %s268 = ssub.s32 128, 128
          %269 = vsyncadd %s263, %s268
          %s270 = smul.addr %s30, 128
          %s271 = scalar_lea.hbm %s1, %s270
          %s273 = sshll.u32 %s266, 4
          %s274 = int_to_ptr.vmem [resolvable:$true] %s273
          %276 = dma.hbm_to_vmem [thread:$0]  %s271, 128, %s274, %s263
        $region36: #{tpu_custom_call.1} parent=31 // pred_fallthru
          _
        // Predicated region
        $region37: #{tpu_custom_call.1} parent=31 // pred_check
          %p277 = pneg %p76
        $region38: #{tpu_custom_call.1} parent=31 // pred_check_branch
          %279 = sbr.rel (%p277) target = $region40
        $region39: #{tpu_custom_call.1} parent=31 // pred_region
          %s280 = sand.u32 %s30, 1
          %s281 = scalar_lea.sflag [#allocation8], %s280
          %s282 = sand.u32 %s66, 1
          %s283 = smul.addr %s282, 8
          %s284 = scalar_lea.vmem [#allocation7], %s283
          %s286 = ssub.s32 128, 128
          %287 = vsyncadd %s281, %s286
          %s288 = smul.addr %s30, 128
          %s289 = scalar_lea.hbm %s2, %s288
          %s291 = sshll.u32 %s284, 4
          %s292 = int_to_ptr.vmem [resolvable:$true] %s291
          %294 = dma.hbm_to_vmem [thread:$0]  %s289, 128, %s292, %s281
        $region40: #{tpu_custom_call.1} parent=31 // pred_fallthru
          _
        // Predicated region
        $region41: #{tpu_custom_call.1} parent=31 // pred_check
          %p295 = pneg %p102
        $region42: #{tpu_custom_call.1} parent=31 // pred_check_branch
          %297 = sbr.rel (%p295) target = $region44
        $region43: #{tpu_custom_call.1} parent=31 // pred_region
          %s298 = sand.u32 %s30, 1
          %s299 = scalar_lea.sflag [#allocation8], %s298
          %s300 = sand.u32 %s92, 1
          %s301 = smul.addr %s300, 8
          %s302 = scalar_lea.vmem [#allocation9], %s301
          %s304 = ssub.s32 128, 128
          %305 = vsyncadd %s299, %s304
          %s306 = smul.addr %s30, 128
          %s307 = scalar_lea.hbm %s3, %s306
          %s309 = sshll.u32 %s302, 4
          %s310 = int_to_ptr.vmem [resolvable:$true] %s309
          %312 = dma.hbm_to_vmem [thread:$0]  %s307, 128, %s310, %s299
        $region44: #{tpu_custom_call.1} parent=31 // pred_fallthru
          _
      $region32: #{tpu_custom_call.1} parent=5 // pred_fallthru
        _
      %p313 = scmp.le.s32.totalorder 1, %s30
      %p314 = scmp.lt.s32.totalorder %s30, 3
      %p315 = pnand %p313, %p314
      %p316 = pneg %p315
      // Predicated region
      $region45: #{tpu_custom_call.1} parent=5 // pred_check
        _
      $region46: #{tpu_custom_call.1} parent=5 // pred_check_branch
        %318 = sbr.rel (%p315) target = $region48
      $region47: #{tpu_custom_call.1} parent=5 // pred_region
        %s319 = ssub.s32 %s30, 1
        %s320 = sand.u32 %s43, 1
        %s321 = scalar_lea.sflag [#allocation5], %s320
        %s322 = sand.u32 %s43, 1
        %s323 = smul.addr %s322, 8
        %s324 = scalar_lea.vmem [#allocation4], %s323
        // Predicated region
        $region49: #{tpu_custom_call.1} parent=47 // pred_check
          %p325 = pneg %p56
        $region50: #{tpu_custom_call.1} parent=47 // pred_check_branch
          %327 = sbr.rel (%p325) target = $region52
        $region51: #{tpu_custom_call.1} parent=47 // pred_region
          %328 = dma.done %s321, 128
        $region52: #{tpu_custom_call.1} parent=47 // pred_fallthru
          _
        %s329 = sand.u32 %s35, 1
        %s330 = scalar_lea.sflag [#allocation8], %s329
        %s331 = sand.u32 %s69, 1
        %s332 = smul.addr %s331, 8
        %s333 = scalar_lea.vmem [#allocation7], %s332
        // Predicated region
        $region53: #{tpu_custom_call.1} parent=47 // pred_check
          %p334 = pneg %p82
        $region54: #{tpu_custom_call.1} parent=47 // pred_check_branch
          %336 = sbr.rel (%p334) target = $region56
        $region55: #{tpu_custom_call.1} parent=47 // pred_region
          %337 = dma.done %s330, 128
        $region56: #{tpu_custom_call.1} parent=47 // pred_fallthru
          _
        %s338 = sand.u32 %s35, 1
        %s339 = scalar_lea.sflag [#allocation8], %s338
        %s340 = sand.u32 %s95, 1
        %s341 = smul.addr %s340, 8
        %s342 = scalar_lea.vmem [#allocation9], %s341
        // Predicated region
        $region57: #{tpu_custom_call.1} parent=47 // pred_check
          %p343 = pneg %p108
        $region58: #{tpu_custom_call.1} parent=47 // pred_check_branch
          %345 = sbr.rel (%p343) target = $region60
        $region59: #{tpu_custom_call.1} parent=47 // pred_region
          %346 = dma.done %s339, 128
        $region60: #{tpu_custom_call.1} parent=47 // pred_fallthru
          _
        // Predicated region
        $region61: #{tpu_custom_call.1} parent=47 // pred_check
          %p347 = pneg %p171
        $region62: #{tpu_custom_call.1} parent=47 // pred_check_branch
          %349 = sbr.rel (%p347) target = $region64
        $region63: #{tpu_custom_call.1} parent=47 // pred_region
          %350 = dma.done [#allocation11], 512
        $region64: #{tpu_custom_call.1} parent=47 // pred_fallthru
          _
        %s351 = sand.u32 %s43, 1
        %s352 = scalar_lea.sflag [#allocation5], %s351
        %s353 = sand.u32 %s43, 1
        %s354 = smul.addr %s353, 8
        %s355 = scalar_lea.vmem [#allocation4], %s354
        %p356 = pneg %p56
        %p357 = pneg %p53
        %s358 = sand.u32 %s35, 1
        %s359 = scalar_lea.sflag [#allocation8], %s358
        %s360 = sand.u32 %s69, 1
        %s361 = smul.addr %s360, 8
        %s362 = scalar_lea.vmem [#allocation7], %s361
        %p363 = pneg %p82
        %p364 = pneg %p79
        %s365 = sand.u32 %s35, 1
        %s366 = scalar_lea.sflag [#allocation8], %s365
        %s367 = sand.u32 %s95, 1
        %s368 = smul.addr %s367, 8
        %s369 = scalar_lea.vmem [#allocation9], %s368
        %p370 = pneg %p108
        %p371 = pneg %p105
        %p372 = pneg %p129
        %p373 = pneg %p126
        %p374 = pneg %p150
        %p375 = pneg %p147
        %p376 = pneg %p171
        %p377 = pneg %p168
        %p378 = pneg %p192
        %p379 = pneg %p189
        %p380 = pneg %p218
        %p381 = pneg %p215
        %s382 = sand.u32 %s205, 1
        %s383 = scalar_lea.sflag [#allocation6], %s382
        %s384 = sand.u32 %s205, 1
        %s385 = smul.addr %s384, 8
        %s386 = scalar_lea.vmem [#allocation12], %s385
        %v387 = vld [vmem:[%s324] sm:$0xff]
        %v388 = vld [vmem:[%s333] sm:$0xff]
        %v389 = vld [vmem:[%s342] sm:$0xff]
        %v390 = vld [vmem:[%s4] sm:$0xff]
        %v391 = vld [vmem:[%s4 + $0x8] sm:$0xff]
        %v392 = vld [vmem:[%s4 + $0x10] sm:$0xff]
        %v393 = vld [vmem:[%s4 + $0x18] sm:$0xff]
        %vm394 = vcmask 261120
        %v396 = vsel %vm394, %v387, 0
        %398 = vmatprep.subr.mxu0 0.0
        %399 = vmatpush1.msra.mxu0 %v390
        %400 = vmatprep.subr.mxu0 0.0
        %401 = vmatpush1.msra.mxu0 %v391
        %402 = vmatprep.subr.mxu0 0.0
        %403 = vmatpush1.msra.mxu0 %v392
        %404 = vmatprep.subr.mxu0 0.0
        %405 = vmatpush1.msra.mxu0 %v393
        %406 = vmatprep.subr.mxu0 0.0
        %407 = vmatpush1.msra.mxu0 0.0
        %408 = vmatprep.subr.mxu0 0.0
        %409 = vmatpush1.msra.mxu0 0.0
        %410 = vmatprep.subr.mxu0 0.0
        %411 = vmatpush1.msra.mxu0 0.0
        %412 = vmatprep.subr.mxu0 0.0
        %413 = vmatpush1.msra.mxu0 0.0
        %414 = vmatprep.subr.mxu0 0.0
        %415 = vmatpush1.msra.mxu0 0.0
        %416 = vmatprep.subr.mxu0 0.0
        %417 = vmatpush1.msra.mxu0 0.0
        %418 = vmatprep.subr.mxu0 0.0
        %419 = vmatpush1.msra.mxu0 0.0
        %420 = vmatprep.subr.mxu0 0.0
        %421 = vmatpush1.msra.mxu0 0.0
        %422 = vmatprep.subr.mxu0 0.0
        %423 = vmatpush1.msra.mxu0 0.0
        %424 = vmatprep.subr.mxu0 0.0
        %425 = vmatpush1.msra.mxu0 0.0
        %426 = vmatprep.subr.mxu0 0.0
        %427 = vmatpush1.msra.mxu0 0.0
        %428 = vmatprep.subr.mxu0 0.0
        %429 = vmatpush1.msra.mxu0 0.0
        %430 = vmatprep.subr.mxu0 0.0
        %431 = vmatpush1.msra.mxu0 0.0
        %432 = vmatprep.subr.mxu0 0.0
        %433 = vmatpush1.msra.mxu0 0.0
        %434 = vmatprep.subr.mxu0 0.0
        %435 = vmatpush1.msra.mxu0 0.0
        %436 = vmatprep.subr.mxu0 0.0
        %437 = vmatpush1.msra.mxu0 0.0
        %438 = vmatprep.subr.mxu0 0.0
        %439 = vmatpush1.msra.mxu0 0.0
        %440 = vmatprep.subr.mxu0 0.0
        %441 = vmatpush1.msra.mxu0 0.0
        %442 = vmatprep.subr.mxu0 0.0
        %443 = vmatpush1.msra.mxu0 0.0
        %444 = vmatprep.subr.mxu0 0.0
        %445 = vmatpush1.msra.mxu0 0.0
        %446 = vmatprep.subr.mxu0 0.0
        %447 = vmatpush1.msra.mxu0 0.0
        %448 = vmatprep.subr.mxu0 0.0
        %449 = vmatpush1.msra.mxu0 0.0
        %450 = vmatprep.subr.mxu0 0.0
        %451 = vmatpush1.msra.mxu0 0.0
        %452 = vmatprep.subr.mxu0 0.0
        %453 = vmatpush1.msra.mxu0 0.0
        %454 = vmatprep.subr.mxu0 0.0
        %455 = vmatpush1.msra.mxu0 0.0
        %456 = vmatprep.subr.mxu0 0.0
        %457 = vmatpush1.msra.mxu0 0.0
        %458 = vmatprep.subr.mxu0 0.0
        %459 = vmatpush1.msra.mxu0 0.0
        %460 = vmatprep.subr.mxu0 0.0
        %461 = vmatpush1.msra.mxu0 0.0
        %462 = vmatprep.mubr.f32.mxu0 0.0
        %463 = vmatmul.mubr.f32.gmra.mrb[0].mxu0 %v396
        %v464 = vpop.f32.mrb[0].mxu0
        %v465 = vadd.f32 0.0, %v464
        %v466 = vpop.f32.mrb[0].mxu0
        %467 = vdwg.mxu0
        %v468 = vld [vmem:[%s5] sm:$0xff]
        %v469 = vld [vmem:[%s5 + $0x8] sm:$0xff]
        %v470 = vld [vmem:[%s5 + $0x10] sm:$0xff]
        %v471 = vld [vmem:[%s5 + $0x18] sm:$0xff]
        %v473 = vsel %vm394, %v388, 0
        %475 = vmatprep.subr.mxu0 0.0
        %476 = vmatpush1.msra.mxu0 %v468
        %477 = vmatprep.subr.mxu0 0.0
        %478 = vmatpush1.msra.mxu0 %v469
        %479 = vmatprep.subr.mxu0 0.0
        %480 = vmatpush1.msra.mxu0 %v470
        %481 = vmatprep.subr.mxu0 0.0
        %482 = vmatpush1.msra.mxu0 %v471
        %483 = vmatprep.subr.mxu0 0.0
        %484 = vmatpush1.msra.mxu0 0.0
        %485 = vmatprep.subr.mxu0 0.0
        %486 = vmatpush1.msra.mxu0 0.0
        %487 = vmatprep.subr.mxu0 0.0
        %488 = vmatpush1.msra.mxu0 0.0
        %489 = vmatprep.subr.mxu0 0.0
        %490 = vmatpush1.msra.mxu0 0.0
        %491 = vmatprep.subr.mxu0 0.0
        %492 = vmatpush1.msra.mxu0 0.0
        %493 = vmatprep.subr.mxu0 0.0
        %494 = vmatpush1.msra.mxu0 0.0
        %495 = vmatprep.subr.mxu0 0.0
        %496 = vmatpush1.msra.mxu0 0.0
        %497 = vmatprep.subr.mxu0 0.0
        %498 = vmatpush1.msra.mxu0 0.0
        %499 = vmatprep.subr.mxu0 0.0
        %500 = vmatpush1.msra.mxu0 0.0
        %501 = vmatprep.subr.mxu0 0.0
        %502 = vmatpush1.msra.mxu0 0.0
        %503 = vmatprep.subr.mxu0 0.0
        %504 = vmatpush1.msra.mxu0 0.0
        %505 = vmatprep.subr.mxu0 0.0
        %506 = vmatpush1.msra.mxu0 0.0
        %507 = vmatprep.subr.mxu0 0.0
        %508 = vmatpush1.msra.mxu0 0.0
        %509 = vmatprep.subr.mxu0 0.0
        %510 = vmatpush1.msra.mxu0 0.0
        %511 = vmatprep.subr.mxu0 0.0
        %512 = vmatpush1.msra.mxu0 0.0
        %513 = vmatprep.subr.mxu0 0.0
        %514 = vmatpush1.msra.mxu0 0.0
        %515 = vmatprep.subr.mxu0 0.0
        %516 = vmatpush1.msra.mxu0 0.0
        %517 = vmatprep.subr.mxu0 0.0
        %518 = vmatpush1.msra.mxu0 0.0
        %519 = vmatprep.subr.mxu0 0.0
        %520 = vmatpush1.msra.mxu0 0.0
        %521 = vmatprep.subr.mxu0 0.0
        %522 = vmatpush1.msra.mxu0 0.0
        %523 = vmatprep.subr.mxu0 0.0
        %524 = vmatpush1.msra.mxu0 0.0
        %525 = vmatprep.subr.mxu0 0.0
        %526 = vmatpush1.msra.mxu0 0.0
        %527 = vmatprep.subr.mxu0 0.0
        %528 = vmatpush1.msra.mxu0 0.0
        %529 = vmatprep.subr.mxu0 0.0
        %530 = vmatpush1.msra.mxu0 0.0
        %531 = vmatprep.subr.mxu0 0.0
        %532 = vmatpush1.msra.mxu0 0.0
        %533 = vmatprep.subr.mxu0 0.0
        %534 = vmatpush1.msra.mxu0 0.0
        %535 = vmatprep.subr.mxu0 0.0
        %536 = vmatpush1.msra.mxu0 0.0
        %537 = vmatprep.subr.mxu0 0.0
        %538 = vmatpush1.msra.mxu0 0.0
        %539 = vmatprep.mubr.f32.mxu0 0.0
        %540 = vmatmul.mubr.f32.gmra.mrb[0].mxu0 %v473
        %v541 = vpop.f32.mrb[0].mxu0
        %v542 = vadd.f32 0.0, %v541
        %v543 = vpop.f32.mrb[0].mxu0
        %544 = vdwg.mxu0
        %v545 = vld [vmem:[#allocation10] sm:$0xff]
        %v546 = vld [vmem:[#allocation10 + $0x8] sm:$0xff]
        %v547 = vld [vmem:[#allocation10 + $0x10] sm:$0xff]
        %v548 = vld [vmem:[#allocation10 + $0x18] sm:$0xff]
        %v550 = vsel %vm394, %v389, 0
        %552 = vmatprep.subr.mxu0 0.0
        %553 = vmatpush1.msra.mxu0 %v545
        %554 = vmatprep.subr.mxu0 0.0
        %555 = vmatpush1.msra.mxu0 %v546
        %556 = vmatprep.subr.mxu0 0.0
        %557 = vmatpush1.msra.mxu0 %v547
        %558 = vmatprep.subr.mxu0 0.0
        %559 = vmatpush1.msra.mxu0 %v548
        %560 = vmatprep.subr.mxu0 0.0
        %561 = vmatpush1.msra.mxu0 0.0
        %562 = vmatprep.subr.mxu0 0.0
        %563 = vmatpush1.msra.mxu0 0.0
        %564 = vmatprep.subr.mxu0 0.0
        %565 = vmatpush1.msra.mxu0 0.0
        %566 = vmatprep.subr.mxu0 0.0
        %567 = vmatpush1.msra.mxu0 0.0
        %568 = vmatprep.subr.mxu0 0.0
        %569 = vmatpush1.msra.mxu0 0.0
        %570 = vmatprep.subr.mxu0 0.0
        %571 = vmatpush1.msra.mxu0 0.0
        %572 = vmatprep.subr.mxu0 0.0
        %573 = vmatpush1.msra.mxu0 0.0
        %574 = vmatprep.subr.mxu0 0.0
        %575 = vmatpush1.msra.mxu0 0.0
        %576 = vmatprep.subr.mxu0 0.0
        %577 = vmatpush1.msra.mxu0 0.0
        %578 = vmatprep.subr.mxu0 0.0
        %579 = vmatpush1.msra.mxu0 0.0
        %580 = vmatprep.subr.mxu0 0.0
        %581 = vmatpush1.msra.mxu0 0.0
        %582 = vmatprep.subr.mxu0 0.0
        %583 = vmatpush1.msra.mxu0 0.0
        %584 = vmatprep.subr.mxu0 0.0
        %585 = vmatpush1.msra.mxu0 0.0
        %586 = vmatprep.subr.mxu0 0.0
        %587 = vmatpush1.msra.mxu0 0.0
        %588 = vmatprep.subr.mxu0 0.0
        %589 = vmatpush1.msra.mxu0 0.0
        %590 = vmatprep.subr.mxu0 0.0
        %591 = vmatpush1.msra.mxu0 0.0
        %592 = vmatprep.subr.mxu0 0.0
        %593 = vmatpush1.msra.mxu0 0.0
        %594 = vmatprep.subr.mxu0 0.0
        %595 = vmatpush1.msra.mxu0 0.0
        %596 = vmatprep.subr.mxu0 0.0
        %597 = vmatpush1.msra.mxu0 0.0
        %598 = vmatprep.subr.mxu0 0.0
        %599 = vmatpush1.msra.mxu0 0.0
        %600 = vmatprep.subr.mxu0 0.0
        %601 = vmatpush1.msra.mxu0 0.0
        %602 = vmatprep.subr.mxu0 0.0
        %603 = vmatpush1.msra.mxu0 0.0
        %604 = vmatprep.subr.mxu0 0.0
        %605 = vmatpush1.msra.mxu0 0.0
        %606 = vmatprep.subr.mxu0 0.0
        %607 = vmatpush1.msra.mxu0 0.0
        %608 = vmatprep.subr.mxu0 0.0
        %609 = vmatpush1.msra.mxu0 0.0
        %610 = vmatprep.subr.mxu0 0.0
        %611 = vmatpush1.msra.mxu0 0.0
        %612 = vmatprep.subr.mxu0 0.0
        %613 = vmatpush1.msra.mxu0 0.0
        %614 = vmatprep.subr.mxu0 0.0
        %615 = vmatpush1.msra.mxu0 0.0
        %616 = vmatprep.mubr.f32.mxu0 0.0
        %617 = vmatmul.mubr.f32.gmra.mrb[0].mxu0 %v550
        %v618 = vpop.f32.mrb[0].mxu0
        %v619 = vadd.f32 0.0, %v618
        %v620 = vpop.f32.mrb[0].mxu0
        %621 = vdwg.mxu0
        %v622 = vlaneseq
        %v623 = vshrl.u32 %v622, 7
        %v624 = vlaneseq
        %v625 = vand.u32 %v624, 127
        %vm626 = vcmp.eq.s32.totalorder %v623, 0
        %s627 = sld [smem:[#allocation3 + %s35]]
        %v628 = vstv %s627
        %v629 = vsel %vm626, %v628, 0
        %vm630 = vcmp.lt.s32.totalorder %v625, %v629
        %v631 = vsel %vm630, 1, 0
        %v632 = vlaneseq
        %v633 = vshrl.u32 %v632, 7
        %v634 = vsub.s32 0, %v633
        %v635 = vrot.slane %v631, %v634
        %vm636 = vcmp.eq.s32.totalorder %v635, 1
        %vm637 = vcmask 130048
        %v639 = vsel %vm637, %v465, 0
        %v642 = vsel %vm637, %v542, 0
        %644 = vmatprep.subr.mxu0 0.0
        %645 = vmatpush1.xpose.msra.mxu0 %v642
        %646 = vmatprep.subr.mxu0 0.0
        %647 = vmatpush1.xpose.msra.mxu0 0.0
        %648 = vmatprep.subr.mxu0 0.0
        %649 = vmatpush1.xpose.msra.mxu0 0.0
        %650 = vmatprep.subr.mxu0 0.0
        %651 = vmatpush1.xpose.msra.mxu0 0.0
        %652 = vmatprep.subr.mxu0 0.0
        %653 = vmatpush1.xpose.msra.mxu0 0.0
        %654 = vmatprep.subr.mxu0 0.0
        %655 = vmatpush1.xpose.msra.mxu0 0.0
        %656 = vmatprep.subr.mxu0 0.0
        %657 = vmatpush1.xpose.msra.mxu0 0.0
        %658 = vmatprep.subr.mxu0 0.0
        %659 = vmatpush1.xpose.msra.mxu0 0.0
        %660 = vmatprep.subr.mxu0 0.0
        %661 = vmatpush1.xpose.msra.mxu0 0.0
        %662 = vmatprep.subr.mxu0 0.0
        %663 = vmatpush1.xpose.msra.mxu0 0.0
        %664 = vmatprep.subr.mxu0 0.0
        %665 = vmatpush1.xpose.msra.mxu0 0.0
        %666 = vmatprep.subr.mxu0 0.0
        %667 = vmatpush1.xpose.msra.mxu0 0.0
        %668 = vmatprep.subr.mxu0 0.0
        %669 = vmatpush1.xpose.msra.mxu0 0.0
        %670 = vmatprep.subr.mxu0 0.0
        %671 = vmatpush1.xpose.msra.mxu0 0.0
        %672 = vmatprep.subr.mxu0 0.0
        %673 = vmatpush1.xpose.msra.mxu0 0.0
        %674 = vmatprep.subr.mxu0 0.0
        %675 = vmatpush1.xpose.msra.mxu0 0.0
        %676 = vmatprep.subr.mxu0 0.0
        %677 = vmatpush1.xpose.msra.mxu0 0.0
        %678 = vmatprep.subr.mxu0 0.0
        %679 = vmatpush1.xpose.msra.mxu0 0.0
        %680 = vmatprep.subr.mxu0 0.0
        %681 = vmatpush1.xpose.msra.mxu0 0.0
        %682 = vmatprep.subr.mxu0 0.0
        %683 = vmatpush1.xpose.msra.mxu0 0.0
        %684 = vmatprep.subr.mxu0 0.0
        %685 = vmatpush1.xpose.msra.mxu0 0.0
        %686 = vmatprep.subr.mxu0 0.0
        %687 = vmatpush1.xpose.msra.mxu0 0.0
        %688 = vmatprep.subr.mxu0 0.0
        %689 = vmatpush1.xpose.msra.mxu0 0.0
        %690 = vmatprep.subr.mxu0 0.0
        %691 = vmatpush1.xpose.msra.mxu0 0.0
        %692 = vmatprep.subr.mxu0 0.0
        %693 = vmatpush1.xpose.msra.mxu0 0.0
        %694 = vmatprep.subr.mxu0 0.0
        %695 = vmatpush1.xpose.msra.mxu0 0.0
        %696 = vmatprep.subr.mxu0 0.0
        %697 = vmatpush1.xpose.msra.mxu0 0.0
        %698 = vmatprep.subr.mxu0 0.0
        %699 = vmatpush1.xpose.msra.mxu0 0.0
        %700 = vmatprep.subr.mxu0 0.0
        %701 = vmatpush1.xpose.msra.mxu0 0.0
        %702 = vmatprep.subr.mxu0 0.0
        %703 = vmatpush1.xpose.msra.mxu0 0.0
        %704 = vmatprep.subr.mxu0 0.0
        %705 = vmatpush1.xpose.msra.mxu0 0.0
        %706 = vmatprep.subr.mxu0 0.0
        %707 = vmatpush1.xpose.msra.mxu0 0.0
        %708 = vmatprep.mubr.f32.mxu0 0.0
        %709 = vmatmul.mubr.f32.gmra.mrb[0].mxu0 %v639
        %v710 = vpop.f32.mrb[0].mxu0
        %v711 = vadd.f32 0.0, %v710
        %v712 = vpop.f32.mrb[0].mxu0
        %713 = vdwg.mxu0
        %v714 = vsel %vm636, %v711, -1000000.0
        %vm715 = vcmask 64512
        %v716 = vsel %vm715, %v714, -inf
        %717 = vmax.xlane.f32.xlu0 %v716
        %v718 = vpop.xlane.xlu0 %717
        %v719 = vsub.f32 %v714, %v718
        %v720 = vmul.f32 %v719, 1.442695
        %v721 = vpow.pop %v720
        %v722 = vsel %vm715, %v721, 0.0
        %723 = vadd.xlane.f32.xlu0 %v722
        %v724 = vpop.xlane.xlu0 %723
        %v725 = vrcp.pop %v724
        %v726 = vmul.f32 %v721, %v725
        %v728 = vsel %vm715, %v726, 0
        %730 = vmatprep.subr.mxu0 0.0
        %731 = vmatpush1.msra.mxu0 %v619
        %732 = vmatprep.subr.mxu0 0.0
        %733 = vmatpush1.msra.mxu0 0.0
        %734 = vmatprep.subr.mxu0 0.0
        %735 = vmatpush1.msra.mxu0 0.0
        %736 = vmatprep.subr.mxu0 0.0
        %737 = vmatpush1.msra.mxu0 0.0
        %738 = vmatprep.subr.mxu0 0.0
        %739 = vmatpush1.msra.mxu0 0.0
        %740 = vmatprep.subr.mxu0 0.0
        %741 = vmatpush1.msra.mxu0 0.0
        %742 = vmatprep.subr.mxu0 0.0
        %743 = vmatpush1.msra.mxu0 0.0
        %744 = vmatprep.subr.mxu0 0.0
        %745 = vmatpush1.msra.mxu0 0.0
        %746 = vmatprep.subr.mxu0 0.0
        %747 = vmatpush1.msra.mxu0 0.0
        %748 = vmatprep.subr.mxu0 0.0
        %749 = vmatpush1.msra.mxu0 0.0
        %750 = vmatprep.subr.mxu0 0.0
        %751 = vmatpush1.msra.mxu0 0.0
        %752 = vmatprep.subr.mxu0 0.0
        %753 = vmatpush1.msra.mxu0 0.0
        %754 = vmatprep.subr.mxu0 0.0
        %755 = vmatpush1.msra.mxu0 0.0
        %756 = vmatprep.subr.mxu0 0.0
        %757 = vmatpush1.msra.mxu0 0.0
        %758 = vmatprep.subr.mxu0 0.0
        %759 = vmatpush1.msra.mxu0 0.0
        %760 = vmatprep.subr.mxu0 0.0
        %761 = vmatpush1.msra.mxu0 0.0
        %762 = vmatprep.subr.mxu0 0.0
        %763 = vmatpush1.msra.mxu0 0.0
        %764 = vmatprep.subr.mxu0 0.0
        %765 = vmatpush1.msra.mxu0 0.0
        %766 = vmatprep.subr.mxu0 0.0
        %767 = vmatpush1.msra.mxu0 0.0
        %768 = vmatprep.subr.mxu0 0.0
        %769 = vmatpush1.msra.mxu0 0.0
        %770 = vmatprep.subr.mxu0 0.0
        %771 = vmatpush1.msra.mxu0 0.0
        %772 = vmatprep.subr.mxu0 0.0
        %773 = vmatpush1.msra.mxu0 0.0
        %774 = vmatprep.subr.mxu0 0.0
        %775 = vmatpush1.msra.mxu0 0.0
        %776 = vmatprep.subr.mxu0 0.0
        %777 = vmatpush1.msra.mxu0 0.0
        %778 = vmatprep.subr.mxu0 0.0
        %779 = vmatpush1.msra.mxu0 0.0
        %780 = vmatprep.subr.mxu0 0.0
        %781 = vmatpush1.msra.mxu0 0.0
        %782 = vmatprep.subr.mxu0 0.0
        %783 = vmatpush1.msra.mxu0 0.0
        %784 = vmatprep.subr.mxu0 0.0
        %785 = vmatpush1.msra.mxu0 0.0
        %786 = vmatprep.subr.mxu0 0.0
        %787 = vmatpush1.msra.mxu0 0.0
        %788 = vmatprep.subr.mxu0 0.0
        %789 = vmatpush1.msra.mxu0 0.0
        %790 = vmatprep.subr.mxu0 0.0
        %791 = vmatpush1.msra.mxu0 0.0
        %792 = vmatprep.subr.mxu0 0.0
        %793 = vmatpush1.msra.mxu0 0.0
        %794 = vmatprep.mubr.f32.mxu0 0.0
        %795 = vmatmul.mubr.f32.gmra.mrb[0].mxu0 %v728
        %v796 = vpop.f32.mrb[0].mxu0
        %v797 = vadd.f32 0.0, %v796
        %v798 = vpop.f32.mrb[0].mxu0
        %799 = vdwg.mxu0
        %800 = vrot.lane.b32.xlu0 %v465, 112
        %v801 = vpop.permute.xlu0 %800
        %802 = vrot.lane.b32.xlu0 %v542, 112
        %v803 = vpop.permute.xlu0 %802
        %v804 = vsel %vm637, %v801, 0
        %v806 = vsel %vm637, %v803, 0
        %808 = vmatprep.subr.mxu0 0.0
        %809 = vmatpush1.xpose.msra.mxu0 %v806
        %810 = vmatprep.subr.mxu0 0.0
        %811 = vmatpush1.xpose.msra.mxu0 0.0
        %812 = vmatprep.subr.mxu0 0.0
        %813 = vmatpush1.xpose.msra.mxu0 0.0
        %814 = vmatprep.subr.mxu0 0.0
        %815 = vmatpush1.xpose.msra.mxu0 0.0
        %816 = vmatprep.subr.mxu0 0.0
        %817 = vmatpush1.xpose.msra.mxu0 0.0
        %818 = vmatprep.subr.mxu0 0.0
        %819 = vmatpush1.xpose.msra.mxu0 0.0
        %820 = vmatprep.subr.mxu0 0.0
        %821 = vmatpush1.xpose.msra.mxu0 0.0
        %822 = vmatprep.subr.mxu0 0.0
        %823 = vmatpush1.xpose.msra.mxu0 0.0
        %824 = vmatprep.subr.mxu0 0.0
        %825 = vmatpush1.xpose.msra.mxu0 0.0
        %826 = vmatprep.subr.mxu0 0.0
        %827 = vmatpush1.xpose.msra.mxu0 0.0
        %828 = vmatprep.subr.mxu0 0.0
        %829 = vmatpush1.xpose.msra.mxu0 0.0
        %830 = vmatprep.subr.mxu0 0.0
        %831 = vmatpush1.xpose.msra.mxu0 0.0
        %832 = vmatprep.subr.mxu0 0.0
        %833 = vmatpush1.xpose.msra.mxu0 0.0
        %834 = vmatprep.subr.mxu0 0.0
        %835 = vmatpush1.xpose.msra.mxu0 0.0
        %836 = vmatprep.subr.mxu0 0.0
        %837 = vmatpush1.xpose.msra.mxu0 0.0
        %838 = vmatprep.subr.mxu0 0.0
        %839 = vmatpush1.xpose.msra.mxu0 0.0
        %840 = vmatprep.subr.mxu0 0.0
        %841 = vmatpush1.xpose.msra.mxu0 0.0
        %842 = vmatprep.subr.mxu0 0.0
        %843 = vmatpush1.xpose.msra.mxu0 0.0
        %844 = vmatprep.subr.mxu0 0.0
        %845 = vmatpush1.xpose.msra.mxu0 0.0
        %846 = vmatprep.subr.mxu0 0.0
        %847 = vmatpush1.xpose.msra.mxu0 0.0
        %848 = vmatprep.subr.mxu0 0.0
        %849 = vmatpush1.xpose.msra.mxu0 0.0
        %850 = vmatprep.subr.mxu0 0.0
        %851 = vmatpush1.xpose.msra.mxu0 0.0
        %852 = vmatprep.subr.mxu0 0.0
        %853 = vmatpush1.xpose.msra.mxu0 0.0
        %854 = vmatprep.subr.mxu0 0.0
        %855 = vmatpush1.xpose.msra.mxu0 0.0
        %856 = vmatprep.subr.mxu0 0.0
        %857 = vmatpush1.xpose.msra.mxu0 0.0
        %858 = vmatprep.subr.mxu0 0.0
        %859 = vmatpush1.xpose.msra.mxu0 0.0
        %860 = vmatprep.subr.mxu0 0.0
        %861 = vmatpush1.xpose.msra.mxu0 0.0
        %862 = vmatprep.subr.mxu0 0.0
        %863 = vmatpush1.xpose.msra.mxu0 0.0
        %864 = vmatprep.subr.mxu0 0.0
        %865 = vmatpush1.xpose.msra.mxu0 0.0
        %866 = vmatprep.subr.mxu0 0.0
        %867 = vmatpush1.xpose.msra.mxu0 0.0
        %868 = vmatprep.subr.mxu0 0.0
        %869 = vmatpush1.xpose.msra.mxu0 0.0
        %870 = vmatprep.subr.mxu0 0.0
        %871 = vmatpush1.xpose.msra.mxu0 0.0
        %872 = vmatprep.mubr.f32.mxu0 0.0
        %873 = vmatmul.mubr.f32.gmra.mrb[0].mxu0 %v804
        %v874 = vpop.f32.mrb[0].mxu0
        %v875 = vadd.f32 0.0, %v874
        %v876 = vpop.f32.mrb[0].mxu0
        %877 = vdwg.mxu0
        %v878 = vsel %vm636, %v875, -1000000.0
        %v879 = vsel %vm715, %v878, -inf
        %880 = vmax.xlane.f32.xlu0 %v879
        %v881 = vpop.xlane.xlu0 %880
        %v882 = vsub.f32 %v878, %v881
        %v883 = vmul.f32 %v882, 1.442695
        %v884 = vpow.pop %v883
        %v885 = vsel %vm715, %v884, 0.0
        %886 = vadd.xlane.f32.xlu0 %v885
        %v887 = vpop.xlane.xlu0 %886
        %v888 = vrcp.pop %v887
        %v889 = vmul.f32 %v884, %v888
        %891 = vrot.lane.b32.xlu0 %v619, 112
        %v892 = vpop.permute.xlu0 %891
        %v895 = vsel %vm715, %v889, 0
        %897 = vmatprep.subr.mxu0 0.0
        %898 = vmatpush1.msra.mxu0 %v892
        %899 = vmatprep.subr.mxu0 0.0
        %900 = vmatpush1.msra.mxu0 0.0
        %901 = vmatprep.subr.mxu0 0.0
        %902 = vmatpush1.msra.mxu0 0.0
        %903 = vmatprep.subr.mxu0 0.0
        %904 = vmatpush1.msra.mxu0 0.0
        %905 = vmatprep.subr.mxu0 0.0
        %906 = vmatpush1.msra.mxu0 0.0
        %907 = vmatprep.subr.mxu0 0.0
        %908 = vmatpush1.msra.mxu0 0.0
        %909 = vmatprep.subr.mxu0 0.0
        %910 = vmatpush1.msra.mxu0 0.0
        %911 = vmatprep.subr.mxu0 0.0
        %912 = vmatpush1.msra.mxu0 0.0
        %913 = vmatprep.subr.mxu0 0.0
        %914 = vmatpush1.msra.mxu0 0.0
        %915 = vmatprep.subr.mxu0 0.0
        %916 = vmatpush1.msra.mxu0 0.0
        %917 = vmatprep.subr.mxu0 0.0
        %918 = vmatpush1.msra.mxu0 0.0
        %919 = vmatprep.subr.mxu0 0.0
        %920 = vmatpush1.msra.mxu0 0.0
        %921 = vmatprep.subr.mxu0 0.0
        %922 = vmatpush1.msra.mxu0 0.0
        %923 = vmatprep.subr.mxu0 0.0
        %924 = vmatpush1.msra.mxu0 0.0
        %925 = vmatprep.subr.mxu0 0.0
        %926 = vmatpush1.msra.mxu0 0.0
        %927 = vmatprep.subr.mxu0 0.0
        %928 = vmatpush1.msra.mxu0 0.0
        %929 = vmatprep.subr.mxu0 0.0
        %930 = vmatpush1.msra.mxu0 0.0
        %931 = vmatprep.subr.mxu0 0.0
        %932 = vmatpush1.msra.mxu0 0.0
        %933 = vmatprep.subr.mxu0 0.0
        %934 = vmatpush1.msra.mxu0 0.0
        %935 = vmatprep.subr.mxu0 0.0
        %936 = vmatpush1.msra.mxu0 0.0
        %937 = vmatprep.subr.mxu0 0.0
        %938 = vmatpush1.msra.mxu0 0.0
        %939 = vmatprep.subr.mxu0 0.0
        %940 = vmatpush1.msra.mxu0 0.0
        %941 = vmatprep.subr.mxu0 0.0
        %942 = vmatpush1.msra.mxu0 0.0
        %943 = vmatprep.subr.mxu0 0.0
        %944 = vmatpush1.msra.mxu0 0.0
        %945 = vmatprep.subr.mxu0 0.0
        %946 = vmatpush1.msra.mxu0 0.0
        %947 = vmatprep.subr.mxu0 0.0
        %948 = vmatpush1.msra.mxu0 0.0
        %949 = vmatprep.subr.mxu0 0.0
        %950 = vmatpush1.msra.mxu0 0.0
        %951 = vmatprep.subr.mxu0 0.0
        %952 = vmatpush1.msra.mxu0 0.0
        %953 = vmatprep.subr.mxu0 0.0
        %954 = vmatpush1.msra.mxu0 0.0
        %955 = vmatprep.subr.mxu0 0.0
        %956 = vmatpush1.msra.mxu0 0.0
        %957 = vmatprep.subr.mxu0 0.0
        %958 = vmatpush1.msra.mxu0 0.0
        %959 = vmatprep.subr.mxu0 0.0
        %960 = vmatpush1.msra.mxu0 0.0
        %961 = vmatprep.mubr.f32.mxu0 0.0
        %962 = vmatmul.mubr.f32.gmra.mrb[0].mxu0 %v895
        %v963 = vpop.f32.mrb[0].mxu0
        %v964 = vadd.f32 0.0, %v963
        %v965 = vpop.f32.mrb[0].mxu0
        %966 = vdwg.mxu0
        %968 = vrot.lane.b32.xlu0 %v964, 16
        %v969 = vpop.permute.xlu0 %968
        %v971 = vsel %vm637, %v797, %v969
        %v972 = vld [vmem:[%s7] sm:$0xff]
        %v973 = vld [vmem:[%s7 + $0x8] sm:$0xff]
        %v974 = vld [vmem:[%s7 + $0x10] sm:$0xff]
        %v975 = vld [vmem:[%s7 + $0x18] sm:$0xff]
        %v977 = vsel %vm394, %v971, 0
        %979 = vmatprep.subr.mxu0 0.0
        %980 = vmatpush1.msra.mxu0 %v972
        %981 = vmatprep.subr.mxu0 0.0
        %982 = vmatpush1.msra.mxu0 %v973
        %983 = vmatprep.subr.mxu0 0.0
        %984 = vmatpush1.msra.mxu0 %v974
        %985 = vmatprep.subr.mxu0 0.0
        %986 = vmatpush1.msra.mxu0 %v975
        %987 = vmatprep.subr.mxu0 0.0
        %988 = vmatpush1.msra.mxu0 0.0
        %989 = vmatprep.subr.mxu0 0.0
        %990 = vmatpush1.msra.mxu0 0.0
        %991 = vmatprep.subr.mxu0 0.0
        %992 = vmatpush1.msra.mxu0 0.0
        %993 = vmatprep.subr.mxu0 0.0
        %994 = vmatpush1.msra.mxu0 0.0
        %995 = vmatprep.subr.mxu0 0.0
        %996 = vmatpush1.msra.mxu0 0.0
        %997 = vmatprep.subr.mxu0 0.0
        %998 = vmatpush1.msra.mxu0 0.0
        %999 = vmatprep.subr.mxu0 0.0
        %1000 = vmatpush1.msra.mxu0 0.0
        %1001 = vmatprep.subr.mxu0 0.0
        %1002 = vmatpush1.msra.mxu0 0.0
        %1003 = vmatprep.subr.mxu0 0.0
        %1004 = vmatpush1.msra.mxu0 0.0
        %1005 = vmatprep.subr.mxu0 0.0
        %1006 = vmatpush1.msra.mxu0 0.0
        %1007 = vmatprep.subr.mxu0 0.0
        %1008 = vmatpush1.msra.mxu0 0.0
        %1009 = vmatprep.subr.mxu0 0.0
        %1010 = vmatpush1.msra.mxu0 0.0
        %1011 = vmatprep.subr.mxu0 0.0
        %1012 = vmatpush1.msra.mxu0 0.0
        %1013 = vmatprep.subr.mxu0 0.0
        %1014 = vmatpush1.msra.mxu0 0.0
        %1015 = vmatprep.subr.mxu0 0.0
        %1016 = vmatpush1.msra.mxu0 0.0
        %1017 = vmatprep.subr.mxu0 0.0
        %1018 = vmatpush1.msra.mxu0 0.0
        %1019 = vmatprep.subr.mxu0 0.0
        %1020 = vmatpush1.msra.mxu0 0.0
        %1021 = vmatprep.subr.mxu0 0.0
        %1022 = vmatpush1.msra.mxu0 0.0
        %1023 = vmatprep.subr.mxu0 0.0
        %1024 = vmatpush1.msra.mxu0 0.0
        %1025 = vmatprep.subr.mxu0 0.0
        %1026 = vmatpush1.msra.mxu0 0.0
        %1027 = vmatprep.subr.mxu0 0.0
        %1028 = vmatpush1.msra.mxu0 0.0
        %1029 = vmatprep.subr.mxu0 0.0
        %1030 = vmatpush1.msra.mxu0 0.0
        %1031 = vmatprep.subr.mxu0 0.0
        %1032 = vmatpush1.msra.mxu0 0.0
        %1033 = vmatprep.subr.mxu0 0.0
        %1034 = vmatpush1.msra.mxu0 0.0
        %1035 = vmatprep.subr.mxu0 0.0
        %1036 = vmatpush1.msra.mxu0 0.0
        %1037 = vmatprep.subr.mxu0 0.0
        %1038 = vmatpush1.msra.mxu0 0.0
        %1039 = vmatprep.subr.mxu0 0.0
        %1040 = vmatpush1.msra.mxu0 0.0
        %1041 = vmatprep.subr.mxu0 0.0
        %1042 = vmatpush1.msra.mxu0 0.0
        %1043 = vmatprep.mubr.f32.mxu0 0.0
        %1044 = vmatmul.mubr.f32.gmra.mrb[0].mxu0 %v977
        %v1045 = vpop.f32.mrb[0].mxu0
        %v1046 = vadd.f32 0.0, %v1045
        %v1047 = vpop.f32.mrb[0].mxu0
        %1048 = vdwg.mxu0
        %1049 = vst.msk [vmem:[%s386] sm:$0xff] %vm637, %v1046
        %s1050 = sand.u32 %s205, 1
        %s1051 = scalar_lea.sflag [#allocation6], %s1050
        %s1052 = sand.u32 %s205, 1
        %s1053 = smul.addr %s1052, 8
        %s1054 = scalar_lea.vmem [#allocation12], %s1053
        // Predicated region
        $region65: #{tpu_custom_call.1} parent=47 // pred_check
          %p1055 = pneg %p215
        $region66: #{tpu_custom_call.1} parent=47 // pred_check_branch
          %1057 = sbr.rel (%p1055) target = $region68
        $region67: #{tpu_custom_call.1} parent=47 // pred_region
          %s1059 = ssub.s32 128, 128
          %1060 = vsyncadd %s1051, %s1059
          %s1061 = smul.addr %s35, 128
          %s1062 = scalar_lea.hbm %s8, %s1061
          %s1064 = sshll.u32 %s1054, 4
          %s1065 = int_to_ptr.vmem [resolvable:$true] %s1064
          %1067 = dma.vmem_to_hbm [thread:$0]  %s1065, 128, %s1062, %s1051
        $region68: #{tpu_custom_call.1} parent=47 // pred_fallthru
          _
      $region48: #{tpu_custom_call.1} parent=5 // pred_fallthru
        _
      %p1068 = scmp.le.s32.totalorder 2, %s30
      // Predicated region
      $region69: #{tpu_custom_call.1} parent=5 // pred_check
        %p1069 = pneg %p1068
      $region70: #{tpu_custom_call.1} parent=5 // pred_check_branch
        %1071 = sbr.rel (%p1069) target = $region72
      $region71: #{tpu_custom_call.1} parent=5 // pred_region
        %s1072 = ssub.s32 %s30, 2
        // Predicated region
        $region73: #{tpu_custom_call.1} parent=71 // pred_check
          %p1073 = pneg %p221
        $region74: #{tpu_custom_call.1} parent=71 // pred_check_branch
          %1075 = sbr.rel (%p1073) target = $region76
        $region75: #{tpu_custom_call.1} parent=71 // pred_region
          %s1076 = sand.u32 %s206, 1
          %s1077 = scalar_lea.sflag [#allocation6], %s1076
          %s1078 = sand.u32 %s206, 1
          %s1079 = smul.addr %s1078, 8
          %s1080 = scalar_lea.vmem [#allocation12], %s1079
          %1081 = dma.done %s1077, 128
        $region76: #{tpu_custom_call.1} parent=71 // pred_fallthru
          _
      $region72: #{tpu_custom_call.1} parent=5 // pred_fallthru
        _
    $region6: #{tpu_custom_call.1} parent=1 // loop_footer
      %s34 = sadd.s32 1, %s30
    $region7: #{tpu_custom_call.1} parent=1 // loop_footer_branch
      %29 = sbr.rel target = $region3
    $region8: #{tpu_custom_call.1} parent=1 // loop_exit
      _
    %1082 = vsyncpa [#allocation5], 1
    %s1083 = scalar_lea.sflag [#allocation5], 1
    %1084 = vsyncpa %s1083, 1
    %1085 = vsyncpa [#allocation8], 1
    %s1086 = scalar_lea.sflag [#allocation8], 1
    %1087 = vsyncpa %s1086, 1
    %1088 = vsyncpa [#allocation11], 1
    %1089 = vsyncpa [#allocation6], 1
    %s1090 = scalar_lea.sflag [#allocation6], 1
    %1091 = vsyncpa %s1090, 1

</llo_original>
